<compile_context>
chip_gen: v6e
topology: v6e:2x2x1
jax: 0.10.0
libtpu: 0.0.40
codegen_flags: <defaults>
</compile_context>

<pallas_src>
import jax
import jax.numpy as jnp
from jax.experimental import pallas as pl
from jax.experimental.pallas import tpu as pltpu


# -----------------------------------------------------------------------------
# Kernel: o = w * x on one lane-dense (TILE_R, LANES) tile.
# -----------------------------------------------------------------------------
def _scalar_mul_kernel(w_ref, x_ref, o_ref):
    # w_ref: (1,) f32 scalar in SMEM.  Cast the scalar (not the tile) to the
    # input dtype so sub-32-bit inputs multiply natively on the VPU; f32
    # inputs are unchanged.  Output dtype equals input dtype, so the final
    # astype is a no-op for floats.
    w = w_ref[0].astype(x_ref.dtype)
    o_ref[...] = (w * x_ref[...]).astype(o_ref.dtype)


def _pick_lanes(n):
    """Largest lane-dense last dim (multiple of 128) that divides n, else None."""
    for lanes in (1024, 512, 256, 128):
        if n % lanes == 0:
            return lanes
    return None


def _pick_tile_rows(rows, lanes, itemsize, target_bytes=4 * 1024 * 1024):
    """Row-tile size: ~4 MiB per block, dtype-aware sublane alignment, and at
    least 2 grid steps for arrays > 2 MiB (v7x megacore sharding)."""
    sub = max(8, 32 // itemsize)          # packed-row quantum: 8/16/32 for f32/bf16/i8
    total_bytes = rows * lanes * itemsize
    if total_bytes <= 2 * 1024 * 1024:
        return rows                       # single full-extent block (exempt from 8-align)
    tile = target_bytes // (lanes * itemsize)
    half = (rows + 1) // 2                # force >= 2 grid steps
    tile = min(tile, half, rows)
    tile = max(sub, (tile // sub) * sub)
    return tile


_MIN_PALLAS_BYTES = 256 * 1024            # below this, pallas_call launch overhead dominates


def scalar_forward(x, weight, *, min_pallas_bytes=_MIN_PALLAS_BYTES):
    """weight * x, matching torch's broadcast of a shape-(1,) parameter."""
    orig_shape = x.shape
    orig_dtype = x.dtype
    n = x.size
    nbytes = n * x.dtype.itemsize
    lanes = _pick_lanes(n)

    # Fallbacks that keep HBM traffic at the 2N-byte minimum (no pad / slice
    # passes, no kernel-launch overhead on tiny inputs):
    #   * non-128-divisible sizes -> XLA fused scalar multiply
    #   * tiny inputs             -> XLA fused scalar multiply
    # TODO(synk): for integer inputs torch promotes to float; here the result
    # is kept in x.dtype on both paths.
    if lanes is None or nbytes < min_pallas_bytes or n == 0:
        return (weight.reshape(())[...] * x).astype(orig_dtype)

    rows = n // lanes
    x2d = x.reshape(rows, lanes)          # free metadata reshape (contiguous array)

    tile_r = _pick_tile_rows(rows, lanes, x2d.dtype.itemsize)
    grid_r = pl.cdiv(rows, tile_r)

    w32 = weight.reshape((1,)).astype(jnp.float32)   # SMEM scalar

    out = pl.pallas_call(
        _scalar_mul_kernel,
        out_shape=jax.ShapeDtypeStruct((rows, lanes), orig_dtype),
        grid_spec=pl.GridSpec(
            grid=(grid_r,),
            in_specs=[
                pl.BlockSpec(memory_space=pltpu.SMEM),            # scalar weight
                pl.BlockSpec((tile_r, lanes), lambda i: (i, 0)),  # streamed tile
            ],
            out_specs=pl.BlockSpec((tile_r, lanes), lambda i: (i, 0)),
        ),
        compiler_params=pltpu.CompilerParams(
            dimension_semantics=("parallel",),
            vmem_limit_bytes=32 * 1024 * 1024,
        ),
        # NOTE: no input_output_aliases — aliasing a reshape of a non-donated
        # caller array makes XLA insert a defensive full copy (an extra HBM
        # read+write), silently negating the intended saving.
    )(w32, x2d)

    return out.reshape(orig_shape)


if __name__ == "__main__":
    key = jax.random.PRNGKey(0)
    kx, kw = jax.random.split(key)

    # Deterministic init of the scalar parameter (torch.randn(1) equivalent).
    weight = jax.random.normal(kw, (1,), dtype=jnp.float32)

    # 1) Spec-sized NCHW input (2,4,16,16): force the Pallas path so the
    #    kernel itself is exercised (default wrapper bails to XLA this small).
    x = jax.random.normal(kx, (2, 4, 16, 16), dtype=jnp.float32)
    y = scalar_forward(x, weight, min_pallas_bytes=0)
    jax.block_until_ready(y)
    ref = weight[0] * x
    assert y.shape == x.shape and y.dtype == x.dtype
    assert jnp.allclose(y, ref, atol=1e-6, rtol=1e-6)

    # 2) Larger aligned input -> default Pallas path with a multi-step grid
    #    (16 MiB, 4 MiB tiles, grid of 4).
    x_big = jax.random.normal(kx, (4, 8, 128, 1024), dtype=jnp.float32)
    y_big = scalar_forward(x_big, weight)
    jax.block_until_ready(y_big)
    assert jnp.allclose(y_big, weight[0] * x_big, atol=1e-6, rtol=1e-6)

    # 3) bf16 input through the kernel (native-dtype multiply in the body).
    x_bf16 = jax.random.normal(kx, (2, 4, 16, 16), dtype=jnp.bfloat16)
    y_bf16 = scalar_forward(x_bf16, weight, min_pallas_bytes=0)
    jax.block_until_ready(y_bf16)
    ref_bf16 = (weight[0] * x_bf16.astype(jnp.float32)).astype(jnp.bfloat16)
    assert y_bf16.dtype == jnp.bfloat16
    assert jnp.allclose(y_bf16.astype(jnp.float32), ref_bf16.astype(jnp.float32),
                        atol=2e-2, rtol=2e-2)

    # 4) Ragged (non-128-divisible) size -> XLA fallback (no pad/slice passes).
    x_odd = jax.random.normal(kx, (2, 3, 5, 7), dtype=jnp.float32)
    y_odd = scalar_forward(x_odd, weight)
    jax.block_until_ready(y_odd)
    assert y_odd.shape == x_odd.shape
    assert jnp.allclose(y_odd, weight[0] * x_odd, atol=1e-6, rtol=1e-6)

    print("KERNEL_OK")
</pallas_src>

<mosaic_0001>
module attributes {stable_mosaic.version = 11 : i64} {
  func.func @_scalar_mul_kernel(%arg0: i32, %arg1: memref<1xf32, #tpu.memory_space<smem>>, %arg2: memref<2x1024xf32, #tpu.memory_space<vmem>>, %arg3: memref<2x1024xf32, #tpu.memory_space<vmem>>) attributes {dimension_semantics = [#tpu.dimension_semantics<parallel>], iteration_bounds = array<i64: 1>, scalar_prefetch = 0 : i64, scratch_operands = 0 : i64, tpu.core_type = #tpu.core_type<tc>, window_params = [{transform_indices = @transform_0, window_bounds = array<i64: 1>}, {transform_indices = @transform_1, window_bounds = array<i64: 2, 1024>}, {transform_indices = @transform_2, window_bounds = array<i64: 2, 1024>}]} {
    %c0 = arith.constant 0 : index
    %0 = memref.load %arg1[%c0] : memref<1xf32, #tpu.memory_space<smem>>
    %c0_0 = arith.constant 0 : index
    %c0_1 = arith.constant 0 : index
    %1 = vector.load %arg2[%c0_0, %c0_1] : memref<2x1024xf32, #tpu.memory_space<vmem>>, vector<2x1024xf32>
    %2 = vector.broadcast %0 : f32 to vector<2x1024xf32>
    %3 = arith.mulf %2, %1 : vector<2x1024xf32>
    %c0_2 = arith.constant 0 : index
    %c0_3 = arith.constant 0 : index
    %4 = vector.load %arg3[%c0_2, %c0_3] : memref<2x1024xf32, #tpu.memory_space<vmem>>, vector<2x1024xf32>
    tpu.vector_store %arg3[%c0_2, %c0_3], %3 {strides = array<i32>} : memref<2x1024xf32, #tpu.memory_space<vmem>>, vector<2x1024xf32>,
    return
  }
  func.func @transform_0(%arg0: i32) -> i32 {
    %c0_i32 = arith.constant 0 : i32
    %c0_i32_0 = arith.constant 0 : i32
    return %c0_i32 : i32
  }
  func.func @transform_1(%arg0: i32) -> (i32, i32) {
    %c0_i32 = arith.constant 0 : i32
    %c0_i32_0 = arith.constant 0 : i32
    return %arg0, %c0_i32 : i32, i32
  }
  func.func @transform_2(%arg0: i32) -> (i32, i32) {
    %c0_i32 = arith.constant 0 : i32
    %c0_i32_0 = arith.constant 0 : i32
    return %arg0, %c0_i32 : i32, i32
  }
}

</mosaic_0001>

<llo_original>
// kernel: tpu_custom_call.1
$region0: #{tpu_custom_call.1}
  #allocation0 [shape = 'u32[]', space=smem, size = 0x4, offset = 0x4, fixed_abs, tag = 'smem constant byte address 0x4 - core index']
  #allocation1 [shape = 'u32[144,128]{1,0:T(1,128)}', space=vmem, size = 0x12000, scoped, tag = 'internal scratch']
  #allocation2 [shape = 'f32[1]{0:T(128)S(6)}', space=smem, size = 0x200, scoped, tag = 'scoped memory for tpu_custom_call.1']
  %s0 = inlined_call_operand.<no memory space> [shape: f32[1], index: 0, kind: input, shape index: {}]
  %s1 = inlined_call_operand.hbm [shape: f32[2,1024], index: 1, kind: input, shape index: {}]
  %s2 = inlined_call_operand.hbm [shape: f32[2,1024], index: 2, kind: output, shape index: {}]
  %s3 = sld [smem:[#allocation0]]
  $region22: #{tpu_custom_call.1} parent=0
    _
  %s5 = ssub.s32 1, %s3
  %s6 = scalar_select 0, %s5, %s3
  %7 = sst [smem:[#allocation2]] %s0
  $region1: #{tpu_custom_call.1} parent=0
    #allocation3 [shape = 'u8[8192]{0}', space=vmem, size = 0x2000, scoped, tag = 'input window, operand 1, single buffered']
    #allocation4 [shape = 's32[1]{0}', space=sflag, size = 0x4, scoped, tag = 'scoped memory for tpu_custom_call.1']
    #allocation5 [shape = 's32[1]{0}', space=sflag, size = 0x4, scoped, tag = 'scoped memory for tpu_custom_call.1']
    #allocation6 [shape = 'u8[8192]{0}', space=vmem, size = 0x2000, scoped, tag = 'output window, operand 0, single buffered']
    %8 = vsyncpa [#allocation4], 0
    %9 = vsyncpa [#allocation5], 0
    // Predicated region
    $region2: #{tpu_custom_call.1} parent=1 // pred_check
      _
    $region3: #{tpu_custom_call.1} parent=1 // pred_check_branch
      %11 = sbr.rel (0) target = $region5
    $region4: #{tpu_custom_call.1} parent=1 // pred_region
      _
    $region5: #{tpu_custom_call.1} parent=1 // pred_fallthru
      _
    // Predicated region
    $region6: #{tpu_custom_call.1} parent=1 // pred_check
      _
    $region7: #{tpu_custom_call.1} parent=1 // pred_check_branch
      %13 = sbr.rel (0) target = $region9
    $region8: #{tpu_custom_call.1} parent=1 // pred_region
      %s15 = ssub.s32 256, 256
      %16 = vsyncadd [#allocation4], %s15
      %s18 = sshll.u32 [#allocation3], 4
      %s19 = int_to_ptr.vmem [resolvable:$true] %s18
      %21 = dma.hbm_to_vmem [thread:$0]  %s1, 256, %s19, [#allocation4]
    $region9: #{tpu_custom_call.1} parent=1 // pred_fallthru
      _
    // Predicated region
    $region10: #{tpu_custom_call.1} parent=1 // pred_check
      _
    $region11: #{tpu_custom_call.1} parent=1 // pred_check_branch
      %23 = sbr.rel (0) target = $region13
    $region12: #{tpu_custom_call.1} parent=1 // pred_region
      %24 = dma.done [#allocation4], 256
    $region13: #{tpu_custom_call.1} parent=1 // pred_fallthru
      _
    %s25 = sld [smem:[#allocation2]]
    %v26 = vld [vmem:[#allocation3] sm:$0xff]
    %v27 = vld [vmem:[#allocation3 + $0x8] sm:$0xff]
    %v28 = vstv %s25
    %v29 = vmul.f32 %v28, %v26
    %v30 = vmul.f32 %v28, %v27
    %31 = vst [vmem:[#allocation6] sm:$0xff] %v29
    %32 = vst [vmem:[#allocation6 + $0x8] sm:$0xff] %v30
    // Predicated region
    $region14: #{tpu_custom_call.1} parent=1 // pred_check
      _
    $region15: #{tpu_custom_call.1} parent=1 // pred_check_branch
      %34 = sbr.rel (0) target = $region17
    $region16: #{tpu_custom_call.1} parent=1 // pred_region
      %s36 = ssub.s32 256, 256
      %37 = vsyncadd [#allocation5], %s36
      %s39 = sshll.u32 [#allocation6], 4
      %s40 = int_to_ptr.vmem [resolvable:$true] %s39
      %42 = dma.vmem_to_hbm [thread:$0]  %s40, 256, %s2, [#allocation5]
    $region17: #{tpu_custom_call.1} parent=1 // pred_fallthru
      _
    // Predicated region
    $region18: #{tpu_custom_call.1} parent=1 // pred_check
      _
    $region19: #{tpu_custom_call.1} parent=1 // pred_check_branch
      %44 = sbr.rel (0) target = $region21
    $region20: #{tpu_custom_call.1} parent=1 // pred_region
      %45 = dma.done [#allocation5], 256
    $region21: #{tpu_custom_call.1} parent=1 // pred_fallthru
      _
    %46 = vsyncpa [#allocation4], 1
    %47 = vsyncpa [#allocation5], 1

</llo_original>
